<compile_context>
chip_gen: v7x
topology: tpu7x:2x2x1
jax: 0.10.0
libtpu: 0.0.40
codegen_flags: <defaults>
</compile_context>

<pallas_src>
import functools

import jax
import jax.numpy as jnp
from jax import lax
from jax.experimental import pallas as pl
from jax.experimental.pallas import tpu as pltpu


def _round_up(x, m):
    return ((x + m - 1) // m) * m


def fasttext_kernel(ids_ref, w1p_ref, b1_ref, w2_ref, b2_ref, out_ref, acc_ref,
                    *, seq_len):
    """One batch tile: gather-accumulate fused (emb @ W1) rows, +b1, ReLU, fc2."""
    tm, hidden = acc_ref.shape
    row0 = pl.program_id(0) * tm
    inv_s = 1.0 / seq_len

    # Mean-pool fused with fc1:  mean_s(emb[ids]) @ W1 == mean_s((emb @ W1)[ids])
    # -> gather rows of the precomputed (V, H) table and accumulate per batch row.
    @pl.loop(0, tm)
    def _(b):
        base = (row0 + b) * seq_len

        def seq_body(s, acc):
            tok = ids_ref[base + s]                    # scalar read from SMEM
            return acc + w1p_ref[pl.ds(tok, 1), :]     # (1, H) row gather (VMEM)

        acc = lax.fori_loop(0, seq_len, seq_body,
                            jnp.zeros((1, hidden), jnp.float32))
        acc_ref[pl.ds(b, 1), :] = acc

    h = jnp.maximum(acc_ref[...] * inv_s + b1_ref[...], 0.0)   # fc1 bias + ReLU
    # TODO(synk): Dropout(0.5) is identity at inference; training-mode mask
    # (random bits + 1/(1-p) scaling) not implemented.
    out_ref[...] = (jnp.dot(h, w2_ref[...], preferred_element_type=jnp.float32)
                    + b2_ref[...]).astype(out_ref.dtype)


def fasttext_forward(ids, emb, w1, b1, w2, b2, *, batch_tile=128):
    B, S = ids.shape
    V, E = emb.shape
    H = w1.shape[1]
    C = w2.shape[1]

    # ---- host-side (plain XLA) preparation --------------------------------
    # Fuse embedding mean-pool with fc1: W1p = emb @ W1, shape (V, H), lane-dense.
    w1p = jnp.dot(emb.astype(jnp.float32), w1.astype(jnp.float32),
                  preferred_element_type=jnp.float32)
    b1r = b1.reshape(1, H).astype(jnp.float32)

    # Lane-dense output: pad classes up to a multiple of 128.
    Cp = _round_up(max(C, 1), 128)
    w2p = jnp.zeros((H, Cp), jnp.float32).at[:, :C].set(w2.astype(jnp.float32))
    b2p = jnp.zeros((1, Cp), jnp.float32).at[:, :C].set(
        b2.reshape(1, C).astype(jnp.float32))

    # Batch tiling (pad B; padded rows gather token 0 and are sliced off).
    tm = min(_round_up(batch_tile, 8), _round_up(B, 8))
    Bp = _round_up(B, tm)
    ids_p = jnp.zeros((Bp, S), jnp.int32).at[:B, :].set(ids.astype(jnp.int32))
    ids_flat = ids_p.reshape(-1)          # 1-D => compact SMEM footprint
    nb = Bp // tm

    grid_spec = pltpu.PrefetchScalarGridSpec(
        num_scalar_prefetch=1,            # ids -> SMEM, readable in the kernel
        grid=(nb,),
        in_specs=[
            pl.BlockSpec((V, H), lambda i, ids: (0, 0)),    # W1p (VMEM resident)
            pl.BlockSpec((1, H), lambda i, ids: (0, 0)),    # b1
            pl.BlockSpec((H, Cp), lambda i, ids: (0, 0)),   # W2 (padded)
            pl.BlockSpec((1, Cp), lambda i, ids: (0, 0)),   # b2 (padded)
        ],
        out_specs=pl.BlockSpec((tm, Cp), lambda i, ids: (i, 0)),
        scratch_shapes=[pltpu.VMEM((tm, H), jnp.float32)],
    )

    # Explicit VMEM budget: resident weights + scratch + double-buffered out tile.
    vmem_bytes = 4 * (V * H + H + H * Cp + Cp + tm * H + 2 * tm * Cp)
    vmem_limit = int(min(max(2 * vmem_bytes, 8 << 20), 32 << 20))

    out_p = pl.pallas_call(
        functools.partial(fasttext_kernel, seq_len=S),
        out_shape=jax.ShapeDtypeStruct((Bp, Cp), jnp.float32),
        grid_spec=grid_spec,
        compiler_params=pltpu.CompilerParams(
            dimension_semantics=("parallel",),
            vmem_limit_bytes=vmem_limit),
    )(ids_flat, w1p, b1r, w2p, b2p)

    return out_p[:B, :C]


def reference_forward(ids, emb, w1, b1, w2, b2):
    embedded = emb[ids]                      # (B, S, E)
    pooled = jnp.mean(embedded, axis=1)      # (B, E)
    h = jnp.maximum(pooled @ w1 + b1, 0.0)   # (B, H)
    return h @ w2 + b2                       # (B, C)


if __name__ == "__main__":
    # Small shapes consistent with the module's forward.
    VOCAB = 50      # vocab_size
    EMB = 32        # embedding_dim
    HIDDEN = 256    # fixed by the module (Linear(embedding_dim, 256))
    CLASSES = 8     # num_classes
    B, S = 2, 8     # batch, sequence length

    key = jax.random.PRNGKey(0)
    k_ids, k_emb, k_w1, k_b1, k_w2, k_b2 = jax.random.split(key, 6)

    ids = jax.random.randint(k_ids, (B, S), 0, VOCAB, dtype=jnp.int32)

    # Deterministic synthetic parameters (shapes match nn.Embedding / nn.Linear).
    emb = jax.random.normal(k_emb, (VOCAB, EMB), dtype=jnp.float32)
    w1 = jax.random.normal(k_w1, (EMB, HIDDEN), dtype=jnp.float32) * (1.0 / jnp.sqrt(EMB))
    b1 = jax.random.normal(k_b1, (1, HIDDEN), dtype=jnp.float32) * 0.01
    w2 = jax.random.normal(k_w2, (HIDDEN, CLASSES), dtype=jnp.float32) * (1.0 / jnp.sqrt(HIDDEN))
    b2 = jax.random.normal(k_b2, (1, CLASSES), dtype=jnp.float32) * 0.01

    out = fasttext_forward(ids, emb, w1, b1, w2, b2)
    out = jax.block_until_ready(out)

    ref = reference_forward(ids, emb, w1, b1, w2, b2)
    assert out.shape == (B, CLASSES)
    # pool+fc1 fusion reassociates f32 sums -> allow a slightly looser tolerance.
    assert jnp.allclose(out, ref, rtol=1e-4, atol=1e-4), "mismatch vs pure-JAX reference"

    print("KERNEL_OK")
</pallas_src>

<mosaic_0001>
module attributes {stable_mosaic.version = 11 : i64} {
  func.func @fasttext_kernel(%arg0: i32, %arg1: memref<64xi32, #tpu.memory_space<smem>>, %arg2: memref<50x256xf32, #tpu.memory_space<vmem>>, %arg3: memref<1x256xf32, #tpu.memory_space<vmem>>, %arg4: memref<256x128xf32, #tpu.memory_space<vmem>>, %arg5: memref<1x128xf32, #tpu.memory_space<vmem>>, %arg6: memref<8x128xf32, #tpu.memory_space<vmem>>, %arg7: memref<8x256xf32, #tpu.memory_space<vmem>>) attributes {dimension_semantics = [#tpu.dimension_semantics<parallel>], iteration_bounds = array<i64: 1>, scalar_prefetch = 1 : i64, scratch_operands = 1 : i64, tpu.core_type = #tpu.core_type<tc>, window_params = [{pipeline_mode = #tpu.pipeline_mode<synchronous>, transform_indices = @transform_0, window_bounds = array<i64: 50, 256>}, {pipeline_mode = #tpu.pipeline_mode<synchronous>, transform_indices = @transform_1, window_bounds = array<i64: 1, 256>}, {pipeline_mode = #tpu.pipeline_mode<synchronous>, transform_indices = @transform_2, window_bounds = array<i64: 256, 128>}, {pipeline_mode = #tpu.pipeline_mode<synchronous>, transform_indices = @transform_3, window_bounds = array<i64: 1, 128>}, {transform_indices = @transform_4, window_bounds = array<i64: 8, 128>}]} {
    %c8_i32 = arith.constant 8 : i32
    %0 = arith.muli %arg0, %c8_i32 : i32
    %c0_i32 = arith.constant 0 : i32
    %c8_i32_0 = arith.constant 8 : i32
    %1 = arith.addi %c0_i32, %c8_i32_0 : i32
    %c1_i32 = arith.constant 1 : i32
    scf.for %arg8 = %c0_i32 to %1 step %c1_i32  : i32 {
      %c1_i32_13 = arith.constant 1 : i32
      %16 = arith.muli %arg8, %c1_i32_13 : i32
      %c0_i32_14 = arith.constant 0 : i32
      %17 = arith.addi %c0_i32_14, %16 : i32
      %18 = arith.addi %0, %17 : i32
      %c8_i32_15 = arith.constant 8 : i32
      %19 = arith.muli %18, %c8_i32_15 : i32
      %cst_16 = arith.constant 0.000000e+00 : f32
      %20 = vector.broadcast %cst_16 : f32 to vector<1x256xf32>
      %c0_i32_17 = arith.constant 0 : i32
      %c8_i32_18 = arith.constant 8 : i32
      %21 = arith.addi %c0_i32_17, %c8_i32_18 : i32
      %c1_i32_19 = arith.constant 1 : i32
      %22 = scf.for %arg9 = %c0_i32_17 to %21 step %c1_i32_19 iter_args(%arg10 = %20) -> (vector<1x256xf32>)  : i32 {
        %25 = arith.addi %19, %arg9 : i32
        %26 = arith.index_cast %25 : i32 to index
        %27 = memref.load %arg1[%26] : memref<64xi32, #tpu.memory_space<smem>>
        %28 = arith.index_cast %27 : i32 to index
        %c0_22 = arith.constant 0 : index
        %29 = vector.load %arg2[%28, %c0_22] : memref<50x256xf32, #tpu.memory_space<vmem>>, vector<1x256xf32>
        %30 = arith.addf %arg10, %29 : vector<1x256xf32>
        scf.yield %30 : vector<1x256xf32>
      }
      %c8_i32_20 = arith.constant 8 : i32
      %23 = arith.index_cast %17 : i32 to index
      %c0_21 = arith.constant 0 : index
      %24 = vector.load %arg7[%23, %c0_21] : memref<8x256xf32, #tpu.memory_space<vmem>>, vector<1x256xf32>
      tpu.vector_store %arg7[%23, %c0_21], %22 {strides = array<i32>} : memref<8x256xf32, #tpu.memory_space<vmem>>, vector<1x256xf32>,
    }
    %c8_i32_1 = arith.constant 8 : i32
    %c0 = arith.constant 0 : index
    %c0_2 = arith.constant 0 : index
    %2 = vector.load %arg7[%c0, %c0_2] : memref<8x256xf32, #tpu.memory_space<vmem>>, vector<8x256xf32>
    %cst = arith.constant 1.250000e-01 : f32
    %3 = vector.broadcast %cst : f32 to vector<8x256xf32>
    %4 = arith.mulf %2, %3 : vector<8x256xf32>
    %c0_3 = arith.constant 0 : index
    %c0_4 = arith.constant 0 : index
    %5 = vector.load %arg3[%c0_3, %c0_4] : memref<1x256xf32, #tpu.memory_space<vmem>>, vector<1x256xf32>
    %6 = vector.broadcast %5 : vector<1x256xf32> to vector<8x256xf32>
    %7 = arith.addf %4, %6 : vector<8x256xf32>
    %cst_5 = arith.constant 0.000000e+00 : f32
    %8 = vector.broadcast %cst_5 : f32 to vector<8x256xf32>
    %9 = arith.maximumf %7, %8 : vector<8x256xf32>
    %c0_6 = arith.constant 0 : index
    %c0_7 = arith.constant 0 : index
    %10 = vector.load %arg4[%c0_6, %c0_7] : memref<256x128xf32, #tpu.memory_space<vmem>>, vector<256x128xf32>
    %cst_8 = arith.constant dense<0.000000e+00> : vector<8x128xf32>
    %11 = tpu.matmul %9, %10, %cst_8 {dimension_numbers = #tpu.dot_dimension_numbers<[1], [0], [0], [1], [0, 0, 1, 1], [], []>} : vector<8x256xf32>, vector<256x128xf32>, vector<8x128xf32> -> vector<8x128xf32>
    %c0_9 = arith.constant 0 : index
    %c0_10 = arith.constant 0 : index
    %12 = vector.load %arg5[%c0_9, %c0_10] : memref<1x128xf32, #tpu.memory_space<vmem>>, vector<1x128xf32>
    %13 = vector.broadcast %12 : vector<1x128xf32> to vector<8x128xf32>
    %14 = arith.addf %11, %13 : vector<8x128xf32>
    %c0_11 = arith.constant 0 : index
    %c0_12 = arith.constant 0 : index
    %15 = vector.load %arg6[%c0_11, %c0_12] : memref<8x128xf32, #tpu.memory_space<vmem>>, vector<8x128xf32>
    tpu.vector_store %arg6[%c0_11, %c0_12], %14 {strides = array<i32>} : memref<8x128xf32, #tpu.memory_space<vmem>>, vector<8x128xf32>,
    return
  }
  func.func @transform_0(%arg0: i32, %arg1: memref<64xi32, #tpu.memory_space<smem>>) -> (i32, i32) {
    %c0_i32 = arith.constant 0 : i32
    %c0_i32_0 = arith.constant 0 : i32
    %c0_i32_1 = arith.constant 0 : i32
    return %c0_i32, %c0_i32_0 : i32, i32
  }
  func.func @transform_1(%arg0: i32, %arg1: memref<64xi32, #tpu.memory_space<smem>>) -> (i32, i32) {
    %c0_i32 = arith.constant 0 : i32
    %c0_i32_0 = arith.constant 0 : i32
    %c0_i32_1 = arith.constant 0 : i32
    return %c0_i32, %c0_i32_0 : i32, i32
  }
  func.func @transform_2(%arg0: i32, %arg1: memref<64xi32, #tpu.memory_space<smem>>) -> (i32, i32) {
    %c0_i32 = arith.constant 0 : i32
    %c0_i32_0 = arith.constant 0 : i32
    %c0_i32_1 = arith.constant 0 : i32
    return %c0_i32, %c0_i32_0 : i32, i32
  }
  func.func @transform_3(%arg0: i32, %arg1: memref<64xi32, #tpu.memory_space<smem>>) -> (i32, i32) {
    %c0_i32 = arith.constant 0 : i32
    %c0_i32_0 = arith.constant 0 : i32
    %c0_i32_1 = arith.constant 0 : i32
    return %c0_i32, %c0_i32_0 : i32, i32
  }
  func.func @transform_4(%arg0: i32, %arg1: memref<64xi32, #tpu.memory_space<smem>>) -> (i32, i32) {
    %c0_i32 = arith.constant 0 : i32
    %c0_i32_0 = arith.constant 0 : i32
    return %arg0, %c0_i32 : i32, i32
  }
}

</mosaic_0001>

<llo_original>
// kernel: tpu_custom_call.1
$region0: #{tpu_custom_call.1}
  #allocation0 [shape = 'u32[]', space=smem, size = 0x4, offset = 0x4, fixed_abs, tag = 'smem constant byte address 0x4 - core index']
  #allocation1 [shape = 'u32[144,128]{1,0:T(1,128)}', space=vmem, size = 0x12000, scoped, tag = 'internal scratch']
  #allocation2 [shape = 'f32[8,256]{1,0:T(8,128)}', space=vmem, size = 0x2000, scoped, tag = 'scratch operand']
  #allocation3 [shape = 's32[1]{0}', space=sflag, size = 0x4, scoped, tag = 'scoped memory for tpu_custom_call.1']
  #allocation4 [shape = 'u8[512]{0}', space=smem, size = 0x200, scoped, tag = 'prefetched SMEM operand 0']
  %s0 = inlined_call_operand.hbm [shape: s32[64], index: 0, kind: input, shape index: {}]
  %s1 = inlined_call_operand.hbm [shape: f32[50,256], index: 1, kind: input, shape index: {}]
  %s2 = inlined_call_operand.vmem [shape: f32[1,256], index: 2, kind: input, shape index: {}]
  %s3 = inlined_call_operand.hbm [shape: f32[256,128], index: 3, kind: input, shape index: {}]
  %s4 = inlined_call_operand.vmem [shape: f32[1,128], index: 4, kind: input, shape index: {}]
  %s5 = inlined_call_operand.hbm [shape: f32[8,128], index: 5, kind: output, shape index: {}]
  %s6 = sld [smem:[#allocation0]]
  $region48: #{tpu_custom_call.1} parent=0
    _
  %s8 = ssub.s32 1, %s6
  %s9 = scalar_select 0, %s8, %s6
  %11 = dma.hbm_to_smem %s0, 16, [#allocation4], [#allocation3]
  %12 = dma.done [#allocation3], 16
  %13 = sfence
  $region1: #{tpu_custom_call.1} parent=0
    #allocation5 [shape = 'u8[57344]{0}', space=vmem, size = 0xe000, scoped, tag = 'input window, operand 1, single buffered']
    #allocation6 [shape = 's32[1]{0}', space=sflag, size = 0x4, scoped, tag = 'scoped memory for tpu_custom_call.1']
    #allocation7 [shape = 's32[1]{0}', space=sflag, size = 0x4, scoped, tag = 'scoped memory for tpu_custom_call.1']
    #allocation8 [shape = 'u8[131072]{0}', space=vmem, size = 0x20000, scoped, tag = 'input window, operand 3, single buffered']
    #allocation9 [shape = 's32[1]{0}', space=sflag, size = 0x4, scoped, tag = 'scoped memory for tpu_custom_call.1']
    #allocation10 [shape = 'u8[4096]{0}', space=vmem, size = 0x1000, scoped, tag = 'output window, operand 0, single buffered']
    %14 = vsyncpa [#allocation6], 0
    %15 = vsyncpa [#allocation9], 0
    %16 = vsyncpa [#allocation7], 0
    // Predicated region
    $region2: #{tpu_custom_call.1} parent=1 // pred_check
      _
    $region3: #{tpu_custom_call.1} parent=1 // pred_check_branch
      %18 = sbr.rel (0) target = $region5
    $region4: #{tpu_custom_call.1} parent=1 // pred_region
      %s20 = ssub.s32 1792, 1792
      %21 = vsyncadd [#allocation6], %s20
      %s22 = sshll.u32 [#allocation5], 4
      %s23 = int_to_ptr.vmem [resolvable:$true] %s22
      %28 = dma.hbm_to_vmem [thread:$0]  %s1, 1792, %s23, [#allocation6], 256, 256, 16
    $region5: #{tpu_custom_call.1} parent=1 // pred_fallthru
      _
    // Predicated region
    $region6: #{tpu_custom_call.1} parent=1 // pred_check
      _
    $region7: #{tpu_custom_call.1} parent=1 // pred_check_branch
      %30 = sbr.rel (0) target = $region9
    $region8: #{tpu_custom_call.1} parent=1 // pred_region
      _
    $region9: #{tpu_custom_call.1} parent=1 // pred_fallthru
      _
    // Predicated region
    $region10: #{tpu_custom_call.1} parent=1 // pred_check
      _
    $region11: #{tpu_custom_call.1} parent=1 // pred_check_branch
      %32 = sbr.rel (0) target = $region13
    $region12: #{tpu_custom_call.1} parent=1 // pred_region
      %s34 = ssub.s32 4096, 4096
      %35 = vsyncadd [#allocation9], %s34
      %s36 = sshll.u32 [#allocation8], 4
      %s37 = int_to_ptr.vmem [resolvable:$true] %s36
      %42 = dma.hbm_to_vmem [thread:$0]  %s3, 4096, %s37, [#allocation9], 128, 128, 8
    $region13: #{tpu_custom_call.1} parent=1 // pred_fallthru
      _
    // Predicated region
    $region14: #{tpu_custom_call.1} parent=1 // pred_check
      _
    $region15: #{tpu_custom_call.1} parent=1 // pred_check_branch
      %44 = sbr.rel (0) target = $region17
    $region16: #{tpu_custom_call.1} parent=1 // pred_region
      _
    $region17: #{tpu_custom_call.1} parent=1 // pred_fallthru
      _
    // Predicated region
    $region18: #{tpu_custom_call.1} parent=1 // pred_check
      _
    $region19: #{tpu_custom_call.1} parent=1 // pred_check_branch
      %46 = sbr.rel (0) target = $region21
    $region20: #{tpu_custom_call.1} parent=1 // pred_region
      %47 = dma.done [#allocation6], 1792
    $region21: #{tpu_custom_call.1} parent=1 // pred_fallthru
      _
    // Predicated region
    $region22: #{tpu_custom_call.1} parent=1 // pred_check
      _
    $region23: #{tpu_custom_call.1} parent=1 // pred_check_branch
      %49 = sbr.rel (0) target = $region25
    $region24: #{tpu_custom_call.1} parent=1 // pred_region
      %50 = dma.done [#allocation9], 4096
    $region25: #{tpu_custom_call.1} parent=1 // pred_fallthru
      _
    %s51 = smul.u32 0, 8
    loop: start=0, step=1, limit=8
    $region26: #{tpu_custom_call.1} parent=1 // loop_pre_header
      _
    $region27: #{tpu_custom_call.1} parent=1 // loop_header
      %s53 = sphi 0, %s57
      %p54 = scmp.ge.s32.totalorder %s53, 8
    $region28: #{tpu_custom_call.1} parent=1 // loop_header_branch
      %56 = sbr.rel (%p54) target = $region32
    $region29: #{tpu_custom_call.1} parent=1 // loop_body
      %s58 = sadd.s32 %s51, %s53
      %s59 = smul.u32 %s58, 8
      loop: start=0, step=1, limit=8
      $region33: #{tpu_custom_call.1} parent=29 // loop_pre_header
        _
      $region34: #{tpu_custom_call.1} parent=29 // loop_header
        %s61 = sphi 0, %s65
        %p62 = scmp.ge.s32.totalorder %s61, 8
        %v66 = vphi 0.0, %v78
      $region35: #{tpu_custom_call.1} parent=29 // loop_header_branch
        %64 = sbr.rel (%p62) target = $region39
      $region36: #{tpu_custom_call.1} parent=29 // loop_body
        %s67 = sadd.s32 %s59, %s61
        %s68 = sld [smem:[#allocation4 + %s67]]
        %s69 = sshra.s32 %s68, 3
        %s70 = sand.u32 %s68, 7
        %s71 = sshra.s32 %s68, 3
        %s72 = sand.u32 %s68, 7
        %s73 = smul.u32 %s69, 2
        %s74 = smul.u32 %s73, 8
        %s75 = sadd.s32 %s74, %s72
        %s76 = scalar_lea.vmem [#allocation5], %s75
        %v77 = vld [vmem:[%s76] ss:$8 sm:$0x3]
        %v78 = vadd.f32 %v66, %v77
      $region37: #{tpu_custom_call.1} parent=29 // loop_footer
        %s65 = sadd.s32 1, %s61
      $region38: #{tpu_custom_call.1} parent=29 // loop_footer_branch
        %60 = sbr.rel target = $region34
      $region39: #{tpu_custom_call.1} parent=29 // loop_exit
        _
      %v79 = vlaneseq
      %vm80 = vcmp.ge.s32.totalorder %v79, 0
      %vm81 = vcmp.lt.s32.totalorder %v79, 256
      %vm82 = vmand %vm80, %vm81
      %s83 = sshra.s32 %s53, 3
      %s84 = sand.u32 %s53, 7
      %s85 = sshra.s32 %s53, 3
      %s86 = sand.u32 %s53, 7
      %s87 = smul.u32 %s83, 2
      %s88 = smul.u32 %s87, 8
      %s89 = sadd.s32 %s88, %s86
      %s90 = scalar_lea.vmem [#allocation2], %s89
      %91 = vst.msk [vmem:[%s90] ss:$8 sm:$0x3] %vm82, %v66
      %92 = vst.msk [vmem:[%s90] ss:$8 sm:$0x0] %vm82, %v66
    $region30: #{tpu_custom_call.1} parent=1 // loop_footer
      %s57 = sadd.s32 1, %s53
    $region31: #{tpu_custom_call.1} parent=1 // loop_footer_branch
      %52 = sbr.rel target = $region27
    $region32: #{tpu_custom_call.1} parent=1 // loop_exit
      _
    %v93 = vld [vmem:[#allocation2] sm:$0xff]
    %v94 = vld [vmem:[#allocation2 + $0x8] sm:$0xff]
    %v95 = vmul.f32 %v93, 0.125
    %v96 = vmul.f32 %v94, 0.125
    %v97 = vld [vmem:[%s2] sm:$0x3]
    %v99 = vlaneseq
    %v100 = vshrl.u32 %v99, 7
    %v101 = vsub.s32 0, %v100
    %v102 = vrot.slane %v97, %v101
    %v103 = vlaneseq
    %v104 = vshrl.u32 %v103, 7
    %v105 = vsub.s32 1, %v104
    %v106 = vrot.slane %v97, %v105
    %v109 = vadd.f32 %v95, %v102
    %v110 = vadd.f32 %v96, %v106
    %v111 = vmax.f32 %v109, 0.0
    %v112 = vmax.f32 %v110, 0.0
    %v113 = vld [vmem:[#allocation8] sm:$0xff]
    %v114 = vld [vmem:[#allocation8 + $0x8] sm:$0xff]
    %v115 = vld [vmem:[#allocation8 + $0x10] sm:$0xff]
    %v116 = vld [vmem:[#allocation8 + $0x18] sm:$0xff]
    %v117 = vld [vmem:[#allocation8 + $0x20] sm:$0xff]
    %v118 = vld [vmem:[#allocation8 + $0x28] sm:$0xff]
    %v119 = vld [vmem:[#allocation8 + $0x30] sm:$0xff]
    %v120 = vld [vmem:[#allocation8 + $0x38] sm:$0xff]
    %v121 = vld [vmem:[#allocation8 + $0x40] sm:$0xff]
    %v122 = vld [vmem:[#allocation8 + $0x48] sm:$0xff]
    %v123 = vld [vmem:[#allocation8 + $0x50] sm:$0xff]
    %v124 = vld [vmem:[#allocation8 + $0x58] sm:$0xff]
    %v125 = vld [vmem:[#allocation8 + $0x60] sm:$0xff]
    %v126 = vld [vmem:[#allocation8 + $0x68] sm:$0xff]
    %v127 = vld [vmem:[#allocation8 + $0x70] sm:$0xff]
    %v128 = vld [vmem:[#allocation8 + $0x78] sm:$0xff]
    %v129 = vld [vmem:[#allocation8 + $0x80] sm:$0xff]
    %v130 = vld [vmem:[#allocation8 + $0x88] sm:$0xff]
    %v131 = vld [vmem:[#allocation8 + $0x90] sm:$0xff]
    %v132 = vld [vmem:[#allocation8 + $0x98] sm:$0xff]
    %v133 = vld [vmem:[#allocation8 + $0xa0] sm:$0xff]
    %v134 = vld [vmem:[#allocation8 + $0xa8] sm:$0xff]
    %v135 = vld [vmem:[#allocation8 + $0xb0] sm:$0xff]
    %v136 = vld [vmem:[#allocation8 + $0xb8] sm:$0xff]
    %v137 = vld [vmem:[#allocation8 + $0xc0] sm:$0xff]
    %v138 = vld [vmem:[#allocation8 + $0xc8] sm:$0xff]
    %v139 = vld [vmem:[#allocation8 + $0xd0] sm:$0xff]
    %v140 = vld [vmem:[#allocation8 + $0xd8] sm:$0xff]
    %v141 = vld [vmem:[#allocation8 + $0xe0] sm:$0xff]
    %v142 = vld [vmem:[#allocation8 + $0xe8] sm:$0xff]
    %v143 = vld [vmem:[#allocation8 + $0xf0] sm:$0xff]
    %v144 = vld [vmem:[#allocation8 + $0xf8] sm:$0xff]
    %v145 = vld [vmem:[%s4] sm:$0x1]
    %v147 = vlaneseq
    %v148 = vshrl.u32 %v147, 7
    %v149 = vsub.s32 0, %v148
    %v150 = vrot.slane %v145, %v149
    %152 = vmatprep.subr.mxu0 0.0
    %153 = vmatpush1.msra.mxu0 %v113
    %154 = vmatprep.subr.mxu0 0.0
    %155 = vmatpush1.msra.mxu0 %v114
    %156 = vmatprep.subr.mxu0 0.0
    %157 = vmatpush1.msra.mxu0 %v115
    %158 = vmatprep.subr.mxu0 0.0
    %159 = vmatpush1.msra.mxu0 %v116
    %160 = vmatprep.subr.mxu0 0.0
    %161 = vmatpush1.msra.mxu0 %v117
    %162 = vmatprep.subr.mxu0 0.0
    %163 = vmatpush1.msra.mxu0 %v118
    %164 = vmatprep.subr.mxu0 0.0
    %165 = vmatpush1.msra.mxu0 %v119
    %166 = vmatprep.subr.mxu0 0.0
    %167 = vmatpush1.msra.mxu0 %v120
    %168 = vmatprep.subr.mxu0 0.0
    %169 = vmatpush1.msra.mxu0 %v121
    %170 = vmatprep.subr.mxu0 0.0
    %171 = vmatpush1.msra.mxu0 %v122
    %172 = vmatprep.subr.mxu0 0.0
    %173 = vmatpush1.msra.mxu0 %v123
    %174 = vmatprep.subr.mxu0 0.0
    %175 = vmatpush1.msra.mxu0 %v124
    %176 = vmatprep.subr.mxu0 0.0
    %177 = vmatpush1.msra.mxu0 %v125
    %178 = vmatprep.subr.mxu0 0.0
    %179 = vmatpush1.msra.mxu0 %v126
    %180 = vmatprep.subr.mxu0 0.0
    %181 = vmatpush1.msra.mxu0 %v127
    %182 = vmatprep.subr.mxu0 0.0
    %183 = vmatpush1.msra.mxu0 %v128
    %184 = vmatprep.subr.mxu0 0.0
    %185 = vmatpush1.msra.mxu0 %v129
    %186 = vmatprep.subr.mxu0 0.0
    %187 = vmatpush1.msra.mxu0 %v130
    %188 = vmatprep.subr.mxu0 0.0
    %189 = vmatpush1.msra.mxu0 %v131
    %190 = vmatprep.subr.mxu0 0.0
    %191 = vmatpush1.msra.mxu0 %v132
    %192 = vmatprep.subr.mxu0 0.0
    %193 = vmatpush1.msra.mxu0 %v133
    %194 = vmatprep.subr.mxu0 0.0
    %195 = vmatpush1.msra.mxu0 %v134
    %196 = vmatprep.subr.mxu0 0.0
    %197 = vmatpush1.msra.mxu0 %v135
    %198 = vmatprep.subr.mxu0 0.0
    %199 = vmatpush1.msra.mxu0 %v136
    %200 = vmatprep.subr.mxu0 0.0
    %201 = vmatpush1.msra.mxu0 %v137
    %202 = vmatprep.subr.mxu0 0.0
    %203 = vmatpush1.msra.mxu0 %v138
    %204 = vmatprep.subr.mxu0 0.0
    %205 = vmatpush1.msra.mxu0 %v139
    %206 = vmatprep.subr.mxu0 0.0
    %207 = vmatpush1.msra.mxu0 %v140
    %208 = vmatprep.subr.mxu0 0.0
    %209 = vmatpush1.msra.mxu0 %v141
    %210 = vmatprep.subr.mxu0 0.0
    %211 = vmatpush1.msra.mxu0 %v142
    %212 = vmatprep.subr.mxu0 0.0
    %213 = vmatpush1.msra.mxu0 %v143
    %214 = vmatprep.subr.mxu0 0.0
    %215 = vmatpush1.msra.mxu0 %v144
    %216 = vmatprep.mubr.f32.mxu0 %v112
    %217 = vmatmul.mubr.f32.gmra.mrb[0].mxu0 %v111
    %v218 = vpop.f32.mrb[0].mxu0
    %v219 = vadd.f32 %v150, %v218
    %v220 = vpop.f32.mrb[0].mxu0
    %221 = vdwg.mxu0
    %222 = vst [vmem:[#allocation10] sm:$0xff] %v219
    // Predicated region
    $region40: #{tpu_custom_call.1} parent=1 // pred_check
      _
    $region41: #{tpu_custom_call.1} parent=1 // pred_check_branch
      %224 = sbr.rel (0) target = $region43
    $region42: #{tpu_custom_call.1} parent=1 // pred_region
      %s226 = ssub.s32 128, 128
      %227 = vsyncadd [#allocation7], %s226
      %s229 = sshll.u32 [#allocation10], 4
      %s230 = int_to_ptr.vmem [resolvable:$true] %s229
      %232 = dma.vmem_to_hbm [thread:$0]  %s230, 128, %s5, [#allocation7]
    $region43: #{tpu_custom_call.1} parent=1 // pred_fallthru
      _
    // Predicated region
    $region44: #{tpu_custom_call.1} parent=1 // pred_check
      _
    $region45: #{tpu_custom_call.1} parent=1 // pred_check_branch
      %234 = sbr.rel (0) target = $region47
    $region46: #{tpu_custom_call.1} parent=1 // pred_region
      %235 = dma.done [#allocation7], 128
    $region47: #{tpu_custom_call.1} parent=1 // pred_fallthru
      _
    %236 = vsyncpa [#allocation6], 1
    %237 = vsyncpa [#allocation9], 1
    %238 = vsyncpa [#allocation7], 1

</llo_original>
